<compile_context>
chip_gen: v5e
topology: v5e:2x2
jax: 0.10.0
libtpu: 0.0.40
codegen_flags: <defaults>
</compile_context>

<pallas_src>
import functools

import jax
import jax.numpy as jnp
from jax.experimental import pallas as pl
from jax.experimental.pallas import tpu as pltpu

LOG_STD_MIN = -20.0
LOG_STD_MAX = 2.0
LN_EPS = 1e-5  # torch.nn.LayerNorm default eps
BIG = float(jnp.finfo(jnp.float32).max)


def _round_up(n, m):
    return (n + m - 1) // m * m


def _layernorm(x):
    # Affine (gamma/beta) is folded into the following matmul at pack time.
    n = x.shape[-1]
    inv_n = 1.0 / n
    mu = jnp.sum(x, axis=-1, keepdims=True) * inv_n
    var = jnp.maximum(jnp.sum(x * x, axis=-1, keepdims=True) * inv_n - mu * mu, 0.0)
    return (x - mu) * jax.lax.rsqrt(var + LN_EPS)


def ppo_actor_kernel(
    x_ref,
    w1_ref, b1_ref,
    w2_ref, b2_ref,
    wh_ref, bh_ref,
    lo_ref, hi_ref,
    out_ref,
):
    x = x_ref[...]  # (TB, obs_dim) bf16

    # fc1 -> relu -> ln1   (bf16 MXU operands, f32 accumulate, f32 vector math)
    h = jnp.dot(x, w1_ref[...], preferred_element_type=jnp.float32) + b1_ref[...]
    h = _layernorm(jnp.maximum(h, 0.0))

    # fc2 (with ln1 affine folded in) -> relu -> ln2
    h = jnp.dot(h.astype(jnp.bfloat16), w2_ref[...],
                preferred_element_type=jnp.float32) + b2_ref[...]
    h = _layernorm(jnp.maximum(h, 0.0))

    # Fused heads (ln2 affine folded in): cols [0, act_dim) = mean,
    # [act_dim, 2*act_dim) = log_std (clamped via lo/hi), rest = zero padding.
    out = jnp.dot(h.astype(jnp.bfloat16), wh_ref[...],
                  preferred_element_type=jnp.float32) + bh_ref[...]
    out = jnp.minimum(jnp.maximum(out, lo_ref[...]), hi_ref[...])
    out_ref[...] = out.astype(out_ref.dtype)


def _choose_tile(B):
    # bf16 x / bf16 out => 16-row sublane granule.
    B16 = _round_up(max(B, 1), 16)
    if B16 <= 256:
        TB = B16                                   # one tile; overhead negligible
    else:
        # Large batch: big tiles, but keep grid >= 2 so v7x can use both TCs.
        TB = min(1024, max(_round_up((B16 + 1) // 2, 16), 128))
    B_pad = _round_up(B16, TB)
    return TB, B_pad


@functools.partial(jax.jit, static_argnames=("act_dim",))
def ppo_actor_forward(x, packed, act_dim):
    B, obs_dim = x.shape
    hidden = packed["w1"].shape[1]
    head_pad = packed["w_head"].shape[1]

    TB, B_pad = _choose_tile(B)

    # Row-pad only (zero rows stay finite through LN); pre-cast to bf16 so the
    # x DMA is 2 bytes/elem and the kernel feeds the MXU directly.
    xp = jnp.zeros((B_pad, obs_dim), jnp.bfloat16).at[:B].set(x.astype(jnp.bfloat16))

    const = lambda i: (0, 0)  # weights/biases resident across the batch grid
    out = pl.pallas_call(
        ppo_actor_kernel,
        out_shape=jax.ShapeDtypeStruct((B_pad, head_pad), jnp.bfloat16),
        grid=(B_pad // TB,),
        in_specs=[
            pl.BlockSpec((TB, obs_dim), lambda i: (i, 0)),   # x tile (bf16)
            pl.BlockSpec((obs_dim, hidden), const),          # w1 (bf16)
            pl.BlockSpec((1, hidden), const),                # b1 (f32)
            pl.BlockSpec((hidden, hidden), const),           # w2 (bf16, g1-folded)
            pl.BlockSpec((1, hidden), const),                # b2 (f32, be1-folded)
            pl.BlockSpec((hidden, head_pad), const),         # fused head W (bf16, g2-folded)
            pl.BlockSpec((1, head_pad), const),              # fused head bias (f32, be2-folded)
            pl.BlockSpec((1, head_pad), const),              # clamp lo
            pl.BlockSpec((1, head_pad), const),              # clamp hi
        ],
        out_specs=pl.BlockSpec((TB, head_pad), lambda i: (i, 0)),
        compiler_params=pltpu.CompilerParams(
            dimension_semantics=("parallel",),
            vmem_limit_bytes=32 * 1024 * 1024,
        ),
    )(xp, packed["w1"], packed["b1"], packed["w2"], packed["b2"],
      packed["w_head"], packed["b_head"], packed["lo"], packed["hi"])

    mean = out[:B, :act_dim].astype(jnp.float32)
    log_std = out[:B, act_dim:2 * act_dim].astype(jnp.float32)
    return mean, log_std


def orthogonal(key, shape, gain):
    # Deterministic orthogonal init (mirrors nn.init.orthogonal_).
    rows, cols = shape
    n = max(rows, cols)
    a = jax.random.normal(key, (n, n), dtype=jnp.float32)
    q, r = jnp.linalg.qr(a)
    d = jnp.diag(r)
    q = q * jnp.where(d == 0, 1.0, jnp.sign(d))  # guard sign(0) == 0
    return gain * q[:rows, :cols]


def init_params(key, obs_dim, act_dim, hidden_dim):
    # Torch-equivalent parameters, stored as (in_dim, out_dim) == W.T, all f32.
    k1, k2, k3, k4 = jax.random.split(key, 4)
    sqrt2 = float(jnp.sqrt(2.0))
    return {
        "w1": orthogonal(k1, (obs_dim, hidden_dim), sqrt2),
        "b1": jnp.zeros((1, hidden_dim), jnp.float32),
        "g1": jnp.ones((1, hidden_dim), jnp.float32),
        "be1": jnp.zeros((1, hidden_dim), jnp.float32),
        "w2": orthogonal(k2, (hidden_dim, hidden_dim), sqrt2),
        "b2": jnp.zeros((1, hidden_dim), jnp.float32),
        "g2": jnp.ones((1, hidden_dim), jnp.float32),
        "be2": jnp.zeros((1, hidden_dim), jnp.float32),
        "wm": orthogonal(k3, (hidden_dim, act_dim), 0.01),
        "bm": jnp.zeros((1, act_dim), jnp.float32),
        "ws": orthogonal(k4, (hidden_dim, act_dim), 0.01),
        "bs": jnp.zeros((1, act_dim), jnp.float32),
    }


def pack_params(p, obs_dim, act_dim, hidden_dim):
    """One-time repack for the kernel:
       - fuse + 128-pad the two heads into one lane-dense output matmul,
       - fold LayerNorm affine params into the following matmul (f32, pre-cast),
       - build per-column clamp lo/hi vectors,
       - cast matmul weights to bf16."""
    head_pad = _round_up(max(2 * act_dim, 1), 128)

    # ln1(h) = n*g1 + be1 feeds fc2:  (n*g1 + be1) @ w2 + b2
    #        = n @ (g1[:,None]*w2) + (be1 @ w2 + b2)
    b2 = p["b2"] + p["be1"] @ p["w2"]
    w2 = p["g1"].reshape(-1, 1) * p["w2"]

    # Fused head (mean | log_std | zero padding), then fold ln2 affine the same way.
    w_head = (
        jnp.zeros((hidden_dim, head_pad), jnp.float32)
        .at[:, :act_dim].set(p["wm"])
        .at[:, act_dim:2 * act_dim].set(p["ws"])
    )
    b_head = (
        jnp.zeros((1, head_pad), jnp.float32)
        .at[:, :act_dim].set(p["bm"])
        .at[:, act_dim:2 * act_dim].set(p["bs"])
    )
    b_head = b_head + p["be2"] @ w_head
    w_head = p["g2"].reshape(-1, 1) * w_head

    # Clamp vectors: +/-BIG (no-op) for mean columns, LOG_STD_MIN/MAX for the
    # log_std columns, 0/0 for padding columns (keeps them exactly zero).
    lo = jnp.full((1, head_pad), -BIG, jnp.float32)
    hi = jnp.full((1, head_pad), BIG, jnp.float32)
    lo = lo.at[:, act_dim:2 * act_dim].set(LOG_STD_MIN).at[:, 2 * act_dim:].set(0.0)
    hi = hi.at[:, act_dim:2 * act_dim].set(LOG_STD_MAX).at[:, 2 * act_dim:].set(0.0)

    return {
        "w1": p["w1"].astype(jnp.bfloat16),
        "b1": p["b1"],
        "w2": w2.astype(jnp.bfloat16),
        "b2": b2,
        "w_head": w_head.astype(jnp.bfloat16),
        "b_head": b_head,
        "lo": lo,
        "hi": hi,
    }


def reference_forward_packed(x, packed, act_dim):
    # Pure-JAX reference with the *same* math as the kernel (bf16 matmul
    # operands, folded-affine one-pass LayerNorm, bf16 output) -> tight tol.
    def ln(h):
        n = h.shape[-1]
        mu = jnp.sum(h, -1, keepdims=True) / n
        var = jnp.maximum(jnp.sum(h * h, -1, keepdims=True) / n - mu * mu, 0.0)
        return (h - mu) * jax.lax.rsqrt(var + LN_EPS)

    h = jnp.dot(x.astype(jnp.bfloat16), packed["w1"],
                preferred_element_type=jnp.float32) + packed["b1"]
    h = ln(jnp.maximum(h, 0.0))
    h = jnp.dot(h.astype(jnp.bfloat16), packed["w2"],
                preferred_element_type=jnp.float32) + packed["b2"]
    h = ln(jnp.maximum(h, 0.0))
    out = jnp.dot(h.astype(jnp.bfloat16), packed["w_head"],
                  preferred_element_type=jnp.float32) + packed["b_head"]
    out = jnp.minimum(jnp.maximum(out, packed["lo"]), packed["hi"])
    out = out.astype(jnp.bfloat16)
    mean = out[:, :act_dim].astype(jnp.float32)
    log_std = out[:, act_dim:2 * act_dim].astype(jnp.float32)
    return mean, log_std


def reference_forward_f32(x, p):
    # PyTorch-semantics reference: f32 everywhere, two-pass LayerNorm.
    def ln(h, g, b):
        mu = jnp.mean(h, axis=-1, keepdims=True)
        var = jnp.mean((h - mu) ** 2, axis=-1, keepdims=True)
        return (h - mu) / jnp.sqrt(var + LN_EPS) * g + b

    h = ln(jnp.maximum(x @ p["w1"] + p["b1"], 0.0), p["g1"], p["be1"])
    h = ln(jnp.maximum(h @ p["w2"] + p["b2"], 0.0), p["g2"], p["be2"])
    mean = h @ p["wm"] + p["bm"]
    log_std = jnp.clip(h @ p["ws"] + p["bs"], LOG_STD_MIN, LOG_STD_MAX)
    return mean, log_std


if __name__ == "__main__":
    obs_dim, act_dim, hidden_dim = 16, 4, 128  # hidden_dim=128 = module default

    key = jax.random.PRNGKey(0)
    kx, kp, kx2 = jax.random.split(key, 3)
    params = init_params(kp, obs_dim, act_dim, hidden_dim)
    packed = pack_params(params, obs_dim, act_dim, hidden_dim)

    # --- small batch (single grid step) ---
    batch = 8
    x = jax.random.normal(kx, (batch, obs_dim), dtype=jnp.float32)
    mean, log_std = ppo_actor_forward(x, packed, act_dim=act_dim)
    jax.block_until_ready((mean, log_std))
    assert mean.shape == (batch, act_dim) and log_std.shape == (batch, act_dim)

    ref_mean, ref_log_std = reference_forward_packed(x, packed, act_dim)
    assert jnp.allclose(mean, ref_mean, atol=2e-2, rtol=2e-2)
    assert jnp.allclose(log_std, ref_log_std, atol=2e-2, rtol=2e-2)

    f32_mean, f32_log_std = reference_forward_f32(x, params)
    assert jnp.allclose(mean, f32_mean, atol=1e-1, rtol=1e-1)
    assert jnp.allclose(log_std, f32_log_std, atol=1e-1, rtol=1e-1)

    # --- larger batch (exercises row padding + grid >= 2) ---
    batch2 = 272
    x2 = jax.random.normal(kx2, (batch2, obs_dim), dtype=jnp.float32)
    mean2, log_std2 = ppo_actor_forward(x2, packed, act_dim=act_dim)
    jax.block_until_ready((mean2, log_std2))
    assert mean2.shape == (batch2, act_dim) and log_std2.shape == (batch2, act_dim)
    r_mean2, r_log_std2 = reference_forward_packed(x2, packed, act_dim)
    assert jnp.allclose(mean2, r_mean2, atol=2e-2, rtol=2e-2)
    assert jnp.allclose(log_std2, r_log_std2, atol=2e-2, rtol=2e-2)

    # TODO(synk): sample_action's Normal.rsample / tanh-squashed log_prob is
    # host-side sampling logic, not part of forward(); omitted from the kernel.
    print("KERNEL_OK")
</pallas_src>

<mosaic_0001>
module attributes {stable_mosaic.version = 11 : i64} {
  func.func @ppo_actor_kernel(%arg0: i32, %arg1: memref<16x16xbf16, #tpu.memory_space<vmem>>, %arg2: memref<16x128xbf16, #tpu.memory_space<vmem>>, %arg3: memref<1x128xf32, #tpu.memory_space<vmem>>, %arg4: memref<128x128xbf16, #tpu.memory_space<vmem>>, %arg5: memref<1x128xf32, #tpu.memory_space<vmem>>, %arg6: memref<128x128xbf16, #tpu.memory_space<vmem>>, %arg7: memref<1x128xf32, #tpu.memory_space<vmem>>, %arg8: memref<1x128xf32, #tpu.memory_space<vmem>>, %arg9: memref<1x128xf32, #tpu.memory_space<vmem>>, %arg10: memref<16x128xbf16, #tpu.memory_space<vmem>>) attributes {dimension_semantics = [#tpu.dimension_semantics<parallel>], iteration_bounds = array<i64: 1>, scalar_prefetch = 0 : i64, scratch_operands = 0 : i64, tpu.core_type = #tpu.core_type<tc>, window_params = [{transform_indices = @transform_0, window_bounds = array<i64: 16, 16>}, {pipeline_mode = #tpu.pipeline_mode<synchronous>, transform_indices = @transform_1, window_bounds = array<i64: 16, 128>}, {pipeline_mode = #tpu.pipeline_mode<synchronous>, transform_indices = @transform_2, window_bounds = array<i64: 1, 128>}, {pipeline_mode = #tpu.pipeline_mode<synchronous>, transform_indices = @transform_3, window_bounds = array<i64: 128, 128>}, {pipeline_mode = #tpu.pipeline_mode<synchronous>, transform_indices = @transform_4, window_bounds = array<i64: 1, 128>}, {pipeline_mode = #tpu.pipeline_mode<synchronous>, transform_indices = @transform_5, window_bounds = array<i64: 128, 128>}, {pipeline_mode = #tpu.pipeline_mode<synchronous>, transform_indices = @transform_6, window_bounds = array<i64: 1, 128>}, {pipeline_mode = #tpu.pipeline_mode<synchronous>, transform_indices = @transform_7, window_bounds = array<i64: 1, 128>}, {pipeline_mode = #tpu.pipeline_mode<synchronous>, transform_indices = @transform_8, window_bounds = array<i64: 1, 128>}, {transform_indices = @transform_9, window_bounds = array<i64: 16, 128>}]} {
    %c0 = arith.constant 0 : index
    %c0_0 = arith.constant 0 : index
    %0 = vector.load %arg1[%c0, %c0_0] : memref<16x16xbf16, #tpu.memory_space<vmem>>, vector<16x16xbf16>
    %c0_1 = arith.constant 0 : index
    %c0_2 = arith.constant 0 : index
    %1 = vector.load %arg2[%c0_1, %c0_2] : memref<16x128xbf16, #tpu.memory_space<vmem>>, vector<16x128xbf16>
    %cst = arith.constant dense<0.000000e+00> : vector<16x128xf32>
    %2 = tpu.matmul %0, %1, %cst {dimension_numbers = #tpu.dot_dimension_numbers<[1], [0], [0], [1], [0, 0, 1, 1], [], []>} : vector<16x16xbf16>, vector<16x128xbf16>, vector<16x128xf32> -> vector<16x128xf32>
    %c0_3 = arith.constant 0 : index
    %c0_4 = arith.constant 0 : index
    %3 = vector.load %arg3[%c0_3, %c0_4] : memref<1x128xf32, #tpu.memory_space<vmem>>, vector<1x128xf32>
    %4 = vector.broadcast %3 : vector<1x128xf32> to vector<16x128xf32>
    %5 = arith.addf %2, %4 : vector<16x128xf32>
    %cst_5 = arith.constant 0.000000e+00 : f32
    %6 = vector.broadcast %cst_5 : f32 to vector<16x128xf32>
    %7 = arith.maximumf %5, %6 : vector<16x128xf32>
    %cst_6 = arith.constant dense<0.000000e+00> : vector<16xf32>
    %8 = vector.multi_reduction <add>, %7, %cst_6 [1] : vector<16x128xf32> to vector<16xf32>
    %9 = vector.shape_cast %8 : vector<16xf32> to vector<16x1xf32>
    %cst_7 = arith.constant 7.812500e-03 : f32
    %10 = vector.broadcast %cst_7 : f32 to vector<16x1xf32>
    %11 = arith.mulf %9, %10 : vector<16x1xf32>
    %12 = arith.mulf %7, %7 : vector<16x128xf32>
    %cst_8 = arith.constant dense<0.000000e+00> : vector<16xf32>
    %13 = vector.multi_reduction <add>, %12, %cst_8 [1] : vector<16x128xf32> to vector<16xf32>
    %14 = vector.shape_cast %13 : vector<16xf32> to vector<16x1xf32>
    %cst_9 = arith.constant 7.812500e-03 : f32
    %15 = vector.broadcast %cst_9 : f32 to vector<16x1xf32>
    %16 = arith.mulf %14, %15 : vector<16x1xf32>
    %17 = arith.mulf %11, %11 : vector<16x1xf32>
    %18 = arith.subf %16, %17 : vector<16x1xf32>
    %cst_10 = arith.constant 0.000000e+00 : f32
    %19 = vector.broadcast %cst_10 : f32 to vector<16x1xf32>
    %20 = arith.maximumf %18, %19 : vector<16x1xf32>
    %21 = vector.broadcast %11 : vector<16x1xf32> to vector<16x128xf32>
    %22 = arith.subf %7, %21 : vector<16x128xf32>
    %cst_11 = arith.constant 9.99999974E-6 : f32
    %23 = vector.broadcast %cst_11 : f32 to vector<16x1xf32>
    %24 = arith.addf %20, %23 : vector<16x1xf32>
    %25 = math.rsqrt %24 : vector<16x1xf32>
    %26 = vector.broadcast %25 : vector<16x1xf32> to vector<16x128xf32>
    %27 = arith.mulf %22, %26 : vector<16x128xf32>
    %28 = arith.truncf %27 : vector<16x128xf32> to vector<16x128xbf16>
    %c0_12 = arith.constant 0 : index
    %c0_13 = arith.constant 0 : index
    %29 = vector.load %arg4[%c0_12, %c0_13] : memref<128x128xbf16, #tpu.memory_space<vmem>>, vector<128x128xbf16>
    %cst_14 = arith.constant dense<0.000000e+00> : vector<16x128xf32>
    %30 = tpu.matmul %28, %29, %cst_14 {dimension_numbers = #tpu.dot_dimension_numbers<[1], [0], [0], [1], [0, 0, 1, 1], [], []>} : vector<16x128xbf16>, vector<128x128xbf16>, vector<16x128xf32> -> vector<16x128xf32>
    %c0_15 = arith.constant 0 : index
    %c0_16 = arith.constant 0 : index
    %31 = vector.load %arg5[%c0_15, %c0_16] : memref<1x128xf32, #tpu.memory_space<vmem>>, vector<1x128xf32>
    %32 = vector.broadcast %31 : vector<1x128xf32> to vector<16x128xf32>
    %33 = arith.addf %30, %32 : vector<16x128xf32>
    %cst_17 = arith.constant 0.000000e+00 : f32
    %34 = vector.broadcast %cst_17 : f32 to vector<16x128xf32>
    %35 = arith.maximumf %33, %34 : vector<16x128xf32>
    %cst_18 = arith.constant dense<0.000000e+00> : vector<16xf32>
    %36 = vector.multi_reduction <add>, %35, %cst_18 [1] : vector<16x128xf32> to vector<16xf32>
    %37 = vector.shape_cast %36 : vector<16xf32> to vector<16x1xf32>
    %cst_19 = arith.constant 7.812500e-03 : f32
    %38 = vector.broadcast %cst_19 : f32 to vector<16x1xf32>
    %39 = arith.mulf %37, %38 : vector<16x1xf32>
    %40 = arith.mulf %35, %35 : vector<16x128xf32>
    %cst_20 = arith.constant dense<0.000000e+00> : vector<16xf32>
    %41 = vector.multi_reduction <add>, %40, %cst_20 [1] : vector<16x128xf32> to vector<16xf32>
    %42 = vector.shape_cast %41 : vector<16xf32> to vector<16x1xf32>
    %cst_21 = arith.constant 7.812500e-03 : f32
    %43 = vector.broadcast %cst_21 : f32 to vector<16x1xf32>
    %44 = arith.mulf %42, %43 : vector<16x1xf32>
    %45 = arith.mulf %39, %39 : vector<16x1xf32>
    %46 = arith.subf %44, %45 : vector<16x1xf32>
    %cst_22 = arith.constant 0.000000e+00 : f32
    %47 = vector.broadcast %cst_22 : f32 to vector<16x1xf32>
    %48 = arith.maximumf %46, %47 : vector<16x1xf32>
    %49 = vector.broadcast %39 : vector<16x1xf32> to vector<16x128xf32>
    %50 = arith.subf %35, %49 : vector<16x128xf32>
    %cst_23 = arith.constant 9.99999974E-6 : f32
    %51 = vector.broadcast %cst_23 : f32 to vector<16x1xf32>
    %52 = arith.addf %48, %51 : vector<16x1xf32>
    %53 = math.rsqrt %52 : vector<16x1xf32>
    %54 = vector.broadcast %53 : vector<16x1xf32> to vector<16x128xf32>
    %55 = arith.mulf %50, %54 : vector<16x128xf32>
    %56 = arith.truncf %55 : vector<16x128xf32> to vector<16x128xbf16>
    %c0_24 = arith.constant 0 : index
    %c0_25 = arith.constant 0 : index
    %57 = vector.load %arg6[%c0_24, %c0_25] : memref<128x128xbf16, #tpu.memory_space<vmem>>, vector<128x128xbf16>
    %cst_26 = arith.constant dense<0.000000e+00> : vector<16x128xf32>
    %58 = tpu.matmul %56, %57, %cst_26 {dimension_numbers = #tpu.dot_dimension_numbers<[1], [0], [0], [1], [0, 0, 1, 1], [], []>} : vector<16x128xbf16>, vector<128x128xbf16>, vector<16x128xf32> -> vector<16x128xf32>
    %c0_27 = arith.constant 0 : index
    %c0_28 = arith.constant 0 : index
    %59 = vector.load %arg7[%c0_27, %c0_28] : memref<1x128xf32, #tpu.memory_space<vmem>>, vector<1x128xf32>
    %60 = vector.broadcast %59 : vector<1x128xf32> to vector<16x128xf32>
    %61 = arith.addf %58, %60 : vector<16x128xf32>
    %c0_29 = arith.constant 0 : index
    %c0_30 = arith.constant 0 : index
    %62 = vector.load %arg8[%c0_29, %c0_30] : memref<1x128xf32, #tpu.memory_space<vmem>>, vector<1x128xf32>
    %63 = vector.broadcast %62 : vector<1x128xf32> to vector<16x128xf32>
    %64 = arith.maximumf %61, %63 : vector<16x128xf32>
    %c0_31 = arith.constant 0 : index
    %c0_32 = arith.constant 0 : index
    %65 = vector.load %arg9[%c0_31, %c0_32] : memref<1x128xf32, #tpu.memory_space<vmem>>, vector<1x128xf32>
    %66 = vector.broadcast %65 : vector<1x128xf32> to vector<16x128xf32>
    %67 = arith.minimumf %64, %66 : vector<16x128xf32>
    %68 = arith.truncf %67 : vector<16x128xf32> to vector<16x128xbf16>
    %c0_33 = arith.constant 0 : index
    %c0_34 = arith.constant 0 : index
    %69 = vector.load %arg10[%c0_33, %c0_34] : memref<16x128xbf16, #tpu.memory_space<vmem>>, vector<16x128xbf16>
    tpu.vector_store %arg10[%c0_33, %c0_34], %68 {strides = array<i32>} : memref<16x128xbf16, #tpu.memory_space<vmem>>, vector<16x128xbf16>,
    return
  }
  func.func @transform_0(%arg0: i32) -> (i32, i32) {
    %c0_i32 = arith.constant 0 : i32
    %c0_i32_0 = arith.constant 0 : i32
    return %arg0, %c0_i32 : i32, i32
  }
  func.func @transform_1(%arg0: i32) -> (i32, i32) {
    %c0_i32 = arith.constant 0 : i32
    %c0_i32_0 = arith.constant 0 : i32
    %c0_i32_1 = arith.constant 0 : i32
    return %c0_i32, %c0_i32_0 : i32, i32
  }
  func.func @transform_2(%arg0: i32) -> (i32, i32) {
    %c0_i32 = arith.constant 0 : i32
    %c0_i32_0 = arith.constant 0 : i32
    %c0_i32_1 = arith.constant 0 : i32
    return %c0_i32, %c0_i32_0 : i32, i32
  }
  func.func @transform_3(%arg0: i32) -> (i32, i32) {
    %c0_i32 = arith.constant 0 : i32
    %c0_i32_0 = arith.constant 0 : i32
    %c0_i32_1 = arith.constant 0 : i32
    return %c0_i32, %c0_i32_0 : i32, i32
  }
  func.func @transform_4(%arg0: i32) -> (i32, i32) {
    %c0_i32 = arith.constant 0 : i32
    %c0_i32_0 = arith.constant 0 : i32
    %c0_i32_1 = arith.constant 0 : i32
    return %c0_i32, %c0_i32_0 : i32, i32
  }
  func.func @transform_5(%arg0: i32) -> (i32, i32) {
    %c0_i32 = arith.constant 0 : i32
    %c0_i32_0 = arith.constant 0 : i32
    %c0_i32_1 = arith.constant 0 : i32
    return %c0_i32, %c0_i32_0 : i32, i32
  }
  func.func @transform_6(%arg0: i32) -> (i32, i32) {
    %c0_i32 = arith.constant 0 : i32
    %c0_i32_0 = arith.constant 0 : i32
    %c0_i32_1 = arith.constant 0 : i32
    return %c0_i32, %c0_i32_0 : i32, i32
  }
  func.func @transform_7(%arg0: i32) -> (i32, i32) {
    %c0_i32 = arith.constant 0 : i32
    %c0_i32_0 = arith.constant 0 : i32
    %c0_i32_1 = arith.constant 0 : i32
    return %c0_i32, %c0_i32_0 : i32, i32
  }
  func.func @transform_8(%arg0: i32) -> (i32, i32) {
    %c0_i32 = arith.constant 0 : i32
    %c0_i32_0 = arith.constant 0 : i32
    %c0_i32_1 = arith.constant 0 : i32
    return %c0_i32, %c0_i32_0 : i32, i32
  }
  func.func @transform_9(%arg0: i32) -> (i32, i32) {
    %c0_i32 = arith.constant 0 : i32
    %c0_i32_0 = arith.constant 0 : i32
    return %arg0, %c0_i32 : i32, i32
  }
}

</mosaic_0001>

<llo_original>
// kernel: ppo_actor_forward.1
$region0: #{ppo_actor_forward.1}
  #allocation0 [shape = 'u32[]', space=smem, size = 0x4, offset = 0x4, fixed_abs, tag = 'smem constant byte address 0x4 - core index']
  #allocation1 [shape = 'u32[72,128]{1,0:T(1,128)}', space=vmem, size = 0x9000, scoped, tag = 'internal scratch']
  %s0 = inlined_call_operand.vmem [shape: bf16[16,16], index: 0, kind: input, shape index: {}]
  %s1 = inlined_call_operand.vmem [shape: bf16[16,128], index: 1, kind: input, shape index: {}]
  %s2 = inlined_call_operand.vmem [shape: f32[1,128], index: 2, kind: input, shape index: {}]
  %s3 = inlined_call_operand.hbm [shape: bf16[128,128], index: 3, kind: input, shape index: {}]
  %s4 = inlined_call_operand.vmem [shape: f32[1,128], index: 4, kind: input, shape index: {}]
  %s5 = inlined_call_operand.hbm [shape: bf16[128,128], index: 5, kind: input, shape index: {}]
  %s6 = inlined_call_operand.vmem [shape: f32[1,128], index: 6, kind: input, shape index: {}]
  %s7 = inlined_call_operand.vmem [shape: f32[1,128], index: 7, kind: input, shape index: {}]
  %s8 = inlined_call_operand.vmem [shape: f32[1,128], index: 8, kind: input, shape index: {}]
  %s9 = inlined_call_operand.vmem [shape: bf16[16,128], index: 9, kind: output, shape index: {}]
  %s10 = sld [smem:[#allocation0]]
  $region54: #{ppo_actor_forward.1} parent=0
    _
  %s12 = ssub.s32 1, %s10
  %s13 = scalar_select 0, %s12, %s10
  $region1: #{ppo_actor_forward.1} parent=0
    #allocation2 [shape = 'u8[32768]{0}', space=vmem, size = 0x8000, scoped, tag = 'input window, operand 3, single buffered']
    #allocation3 [shape = 's32[1]{0}', space=sflag, size = 0x4, scoped, tag = 'scoped memory for ppo_actor_forward.1']
    #allocation4 [shape = 'u8[32768]{0}', space=vmem, size = 0x8000, scoped, tag = 'input window, operand 5, single buffered']
    #allocation5 [shape = 's32[1]{0}', space=sflag, size = 0x4, scoped, tag = 'scoped memory for ppo_actor_forward.1']
    %14 = vsyncpa [#allocation3], 0
    %15 = vsyncpa [#allocation5], 0
    // Predicated region
    $region2: #{ppo_actor_forward.1} parent=1 // pred_check
      _
    $region3: #{ppo_actor_forward.1} parent=1 // pred_check_branch
      %17 = sbr.rel (0) target = $region5
    $region4: #{ppo_actor_forward.1} parent=1 // pred_region
      _
    $region5: #{ppo_actor_forward.1} parent=1 // pred_fallthru
      _
    // Predicated region
    $region6: #{ppo_actor_forward.1} parent=1 // pred_check
      _
    $region7: #{ppo_actor_forward.1} parent=1 // pred_check_branch
      %19 = sbr.rel (0) target = $region9
    $region8: #{ppo_actor_forward.1} parent=1 // pred_region
      _
    $region9: #{ppo_actor_forward.1} parent=1 // pred_fallthru
      _
    // Predicated region
    $region10: #{ppo_actor_forward.1} parent=1 // pred_check
      _
    $region11: #{ppo_actor_forward.1} parent=1 // pred_check_branch
      %21 = sbr.rel (0) target = $region13
    $region12: #{ppo_actor_forward.1} parent=1 // pred_region
      _
    $region13: #{ppo_actor_forward.1} parent=1 // pred_fallthru
      _
    // Predicated region
    $region14: #{ppo_actor_forward.1} parent=1 // pred_check
      _
    $region15: #{ppo_actor_forward.1} parent=1 // pred_check_branch
      %23 = sbr.rel (0) target = $region17
    $region16: #{ppo_actor_forward.1} parent=1 // pred_region
      %25 = vsyncadd [#allocation3], 0
      %s26 = sshll.u32 %s3, 4
      %s27 = int_to_ptr.hbm [resolvable:$true] %s26
      %s28 = sshll.u32 [#allocation2], 4
      %s29 = int_to_ptr.vmem [resolvable:$true] %s28
      %34 = dma.hbm_to_vmem [thread:$0]  %s27, 1024, %s29, [#allocation3], 64, 64, 4
    $region17: #{ppo_actor_forward.1} parent=1 // pred_fallthru
      _
    // Predicated region
    $region18: #{ppo_actor_forward.1} parent=1 // pred_check
      _
    $region19: #{ppo_actor_forward.1} parent=1 // pred_check_branch
      %36 = sbr.rel (0) target = $region21
    $region20: #{ppo_actor_forward.1} parent=1 // pred_region
      _
    $region21: #{ppo_actor_forward.1} parent=1 // pred_fallthru
      _
    // Predicated region
    $region22: #{ppo_actor_forward.1} parent=1 // pred_check
      _
    $region23: #{ppo_actor_forward.1} parent=1 // pred_check_branch
      %38 = sbr.rel (0) target = $region25
    $region24: #{ppo_actor_forward.1} parent=1 // pred_region
      %40 = vsyncadd [#allocation5], 0
      %s41 = sshll.u32 %s5, 4
      %s42 = int_to_ptr.hbm [resolvable:$true] %s41
      %s43 = sshll.u32 [#allocation4], 4
      %s44 = int_to_ptr.vmem [resolvable:$true] %s43
      %49 = dma.hbm_to_vmem [thread:$0]  %s42, 1024, %s44, [#allocation5], 64, 64, 4
    $region25: #{ppo_actor_forward.1} parent=1 // pred_fallthru
      _
    // Predicated region
    $region26: #{ppo_actor_forward.1} parent=1 // pred_check
      _
    $region27: #{ppo_actor_forward.1} parent=1 // pred_check_branch
      %51 = sbr.rel (0) target = $region29
    $region28: #{ppo_actor_forward.1} parent=1 // pred_region
      _
    $region29: #{ppo_actor_forward.1} parent=1 // pred_fallthru
      _
    // Predicated region
    $region30: #{ppo_actor_forward.1} parent=1 // pred_check
      _
    $region31: #{ppo_actor_forward.1} parent=1 // pred_check_branch
      %53 = sbr.rel (0) target = $region33
    $region32: #{ppo_actor_forward.1} parent=1 // pred_region
      _
    $region33: #{ppo_actor_forward.1} parent=1 // pred_fallthru
      _
    // Predicated region
    $region34: #{ppo_actor_forward.1} parent=1 // pred_check
      _
    $region35: #{ppo_actor_forward.1} parent=1 // pred_check_branch
      %55 = sbr.rel (0) target = $region37
    $region36: #{ppo_actor_forward.1} parent=1 // pred_region
      _
    $region37: #{ppo_actor_forward.1} parent=1 // pred_fallthru
      _
    // Predicated region
    $region38: #{ppo_actor_forward.1} parent=1 // pred_check
      _
    $region39: #{ppo_actor_forward.1} parent=1 // pred_check_branch
      %57 = sbr.rel (0) target = $region41
    $region40: #{ppo_actor_forward.1} parent=1 // pred_region
      %59 = dma.done [#allocation3], 1024
    $region41: #{ppo_actor_forward.1} parent=1 // pred_fallthru
      _
    // Predicated region
    $region42: #{ppo_actor_forward.1} parent=1 // pred_check
      _
    $region43: #{ppo_actor_forward.1} parent=1 // pred_check_branch
      %61 = sbr.rel (0) target = $region45
    $region44: #{ppo_actor_forward.1} parent=1 // pred_region
      %63 = dma.done [#allocation5], 1024
    $region45: #{ppo_actor_forward.1} parent=1 // pred_fallthru
      _
    %v65 = vld [vmem:[%s0] sm:$0xf]
    %v66 = vld [vmem:[%s0 + $0x4] sm:$0xf]
    %v67 = vld [vmem:[%s1] sm:$0xf]
    %v68 = vld [vmem:[%s1 + $0x4] sm:$0xf]
    %v69 = vld [vmem:[%s2] sm:$0x1]
    %v71 = vperm.slane %v69, 0
    %v75 = vunpack.c.l.b16 %v65
    %v76 = vunpack.c.l.b16 %v66
    %v77 = vpack.c.b16 %v76, %v75
    %v80 = vunpack.c.l.b16 %v67
    %v81 = vunpack.c.l.b16 %v68
    %v82 = vpack.c.b16 %v81, %v80
    %vm84 = vcmask 130048
    %v86 = vsel %vm84, %v77, 0
    %88 = vmatpush.bf16.msra.mxu0 0
    %89 = vmatpush.bf16.msra.mxu0 0
    %90 = vmatpush.bf16.msra.mxu0 0
    %91 = vmatpush.bf16.msra.mxu0 0
    %92 = vmatpush.bf16.msra.mxu0 0
    %93 = vmatpush.bf16.msra.mxu0 0
    %94 = vmatpush.bf16.msra.mxu0 0
    %95 = vmatpush.bf16.msra.mxu0 %v82
    %96 = vmatmul.bf16.gmra.mxu0 %v86
    %v97 = vpop.f32.mrf.mxu0
    %v98 = vadd.f32 %v71, %v97
    %v99 = vpop.f32.mrf.mxu0
    %v100 = vadd.f32 %v71, %v99
    %101 = vdwg.mxu0
    %v102 = vmax.f32 %v98, 0.0
    %v103 = vmax.f32 %v100, 0.0
    %104 = vadd.xlane.f32.xlu0 %v102
    %v105 = vpop.xlane.xlu0 %104
    %106 = vadd.xlane.f32.xlu0 %v103
    %v107 = vpop.xlane.xlu0 %106
    %v108 = vmul.f32 %v105, 0.0078125
    %v109 = vmul.f32 %v107, 0.0078125
    %v110 = vmul.f32 %v102, %v102
    %v111 = vmul.f32 %v103, %v103
    %112 = vadd.xlane.f32.xlu0 %v110
    %v113 = vpop.xlane.xlu0 %112
    %114 = vadd.xlane.f32.xlu0 %v111
    %v115 = vpop.xlane.xlu0 %114
    %v116 = vmul.f32 %v113, 0.0078125
    %v117 = vmul.f32 %v115, 0.0078125
    %v118 = vmul.f32 %v108, %v108
    %v119 = vmul.f32 %v109, %v109
    %v120 = vsub.f32 %v116, %v118
    %v121 = vsub.f32 %v117, %v119
    %v122 = vmax.f32 %v120, 0.0
    %v123 = vmax.f32 %v121, 0.0
    %v124 = vsub.f32 %v102, %v108
    %v125 = vsub.f32 %v103, %v109
    %v126 = vadd.f32 %v122, 1e-05
    %v127 = vadd.f32 %v123, 1e-05
    %v128 = vrsqrt.pop %v126
    %v129 = vmul.f32 %v128, %v126
    %v130 = vmul.f32 %v129, %v128
    %v131 = vmul.f32 0.5, %v130
    %v132 = vsub.f32 1.5, %v131
    %v133 = vmul.f32 %v128, %v132
    %vm134 = vweird.f32 %v126
    %vm135 = vweird.f32 %v128
    %vm136 = vmor %vm134, %vm135
    %v137 = vsel %vm136, %v128, %v133
    %v138 = vrsqrt.pop %v127
    %v139 = vmul.f32 %v138, %v127
    %v140 = vmul.f32 %v139, %v138
    %v141 = vmul.f32 0.5, %v140
    %v142 = vsub.f32 1.5, %v141
    %v143 = vmul.f32 %v138, %v142
    %vm144 = vweird.f32 %v127
    %vm145 = vweird.f32 %v138
    %vm146 = vmor %vm144, %vm145
    %v147 = vsel %vm146, %v138, %v143
    %v148 = vmul.f32 %v124, %v137
    %v149 = vmul.f32 %v125, %v147
    %v150 = vpack.c.bf16 %v149, %v148
    %v151 = vld [vmem:[#allocation2] sm:$0xf]
    %v152 = vld [vmem:[#allocation2 + $0x4] sm:$0xf]
    %v153 = vld [vmem:[#allocation2 + $0x8] sm:$0xf]
    %v154 = vld [vmem:[#allocation2 + $0xc] sm:$0xf]
    %v155 = vld [vmem:[#allocation2 + $0x10] sm:$0xf]
    %v156 = vld [vmem:[#allocation2 + $0x14] sm:$0xf]
    %v157 = vld [vmem:[#allocation2 + $0x18] sm:$0xf]
    %v158 = vld [vmem:[#allocation2 + $0x1c] sm:$0xf]
    %v159 = vld [vmem:[#allocation2 + $0x20] sm:$0xf]
    %v160 = vld [vmem:[#allocation2 + $0x24] sm:$0xf]
    %v161 = vld [vmem:[#allocation2 + $0x28] sm:$0xf]
    %v162 = vld [vmem:[#allocation2 + $0x2c] sm:$0xf]
    %v163 = vld [vmem:[#allocation2 + $0x30] sm:$0xf]
    %v164 = vld [vmem:[#allocation2 + $0x34] sm:$0xf]
    %v165 = vld [vmem:[#allocation2 + $0x38] sm:$0xf]
    %v166 = vld [vmem:[#allocation2 + $0x3c] sm:$0xf]
    %v167 = vld [vmem:[%s4] sm:$0x1]
    %v169 = vperm.slane %v167, 0
    %v187 = vunpack.c.l.b16 %v151
    %v188 = vunpack.c.l.b16 %v152
    %v189 = vunpack.c.l.b16 %v153
    %v190 = vunpack.c.l.b16 %v154
    %v191 = vunpack.c.l.b16 %v155
    %v192 = vunpack.c.l.b16 %v156
    %v193 = vunpack.c.l.b16 %v157
    %v194 = vunpack.c.l.b16 %v158
    %v195 = vunpack.c.l.b16 %v159
    %v196 = vunpack.c.l.b16 %v160
    %v197 = vunpack.c.l.b16 %v161
    %v198 = vunpack.c.l.b16 %v162
    %v199 = vunpack.c.l.b16 %v163
    %v200 = vunpack.c.l.b16 %v164
    %v201 = vunpack.c.l.b16 %v165
    %v202 = vunpack.c.l.b16 %v166
    %v203 = vpack.c.b16 %v188, %v187
    %v204 = vpack.c.b16 %v190, %v189
    %v205 = vpack.c.b16 %v192, %v191
    %v206 = vpack.c.b16 %v194, %v193
    %v207 = vpack.c.b16 %v196, %v195
    %v208 = vpack.c.b16 %v198, %v197
    %v209 = vpack.c.b16 %v200, %v199
    %v210 = vpack.c.b16 %v202, %v201
    %219 = vmatpush.bf16.msra.mxu0 %v210
    %220 = vmatpush.bf16.msra.mxu0 %v209
    %221 = vmatpush.bf16.msra.mxu0 %v208
    %222 = vmatpush.bf16.msra.mxu0 %v207
    %223 = vmatpush.bf16.msra.mxu0 %v206
    %224 = vmatpush.bf16.msra.mxu0 %v205
    %225 = vmatpush.bf16.msra.mxu0 %v204
    %226 = vmatpush.bf16.msra.mxu0 %v203
    %227 = vmatmul.bf16.gmra.mxu0 %v150
    %v228 = vpop.f32.mrf.mxu0
    %v229 = vadd.f32 %v169, %v228
    %v230 = vpop.f32.mrf.mxu0
    %v231 = vadd.f32 %v169, %v230
    %232 = vdwg.mxu0
    %v233 = vmax.f32 %v229, 0.0
    %v234 = vmax.f32 %v231, 0.0
    %235 = vadd.xlane.f32.xlu0 %v233
    %v236 = vpop.xlane.xlu0 %235
    %237 = vadd.xlane.f32.xlu0 %v234
    %v238 = vpop.xlane.xlu0 %237
    %v239 = vmul.f32 %v236, 0.0078125
    %v240 = vmul.f32 %v238, 0.0078125
    %v241 = vmul.f32 %v233, %v233
    %v242 = vmul.f32 %v234, %v234
    %243 = vadd.xlane.f32.xlu0 %v241
    %v244 = vpop.xlane.xlu0 %243
    %245 = vadd.xlane.f32.xlu0 %v242
    %v246 = vpop.xlane.xlu0 %245
    %v247 = vmul.f32 %v244, 0.0078125
    %v248 = vmul.f32 %v246, 0.0078125
    %v249 = vmul.f32 %v239, %v239
    %v250 = vmul.f32 %v240, %v240
    %v251 = vsub.f32 %v247, %v249
    %v252 = vsub.f32 %v248, %v250
    %v253 = vmax.f32 %v251, 0.0
    %v254 = vmax.f32 %v252, 0.0
    %v255 = vsub.f32 %v233, %v239
    %v256 = vsub.f32 %v234, %v240
    %v257 = vadd.f32 %v253, 1e-05
    %v258 = vadd.f32 %v254, 1e-05
    %v259 = vrsqrt.pop %v257
    %v260 = vmul.f32 %v259, %v257
    %v261 = vmul.f32 %v260, %v259
    %v262 = vmul.f32 0.5, %v261
    %v263 = vsub.f32 1.5, %v262
    %v264 = vmul.f32 %v259, %v263
    %vm265 = vweird.f32 %v257
    %vm266 = vweird.f32 %v259
    %vm267 = vmor %vm265, %vm266
    %v268 = vsel %vm267, %v259, %v264
    %v269 = vrsqrt.pop %v258
    %v270 = vmul.f32 %v269, %v258
    %v271 = vmul.f32 %v270, %v269
    %v272 = vmul.f32 0.5, %v271
    %v273 = vsub.f32 1.5, %v272
    %v274 = vmul.f32 %v269, %v273
    %vm275 = vweird.f32 %v258
    %vm276 = vweird.f32 %v269
    %vm277 = vmor %vm275, %vm276
    %v278 = vsel %vm277, %v269, %v274
    %v279 = vmul.f32 %v255, %v268
    %v280 = vmul.f32 %v256, %v278
    %v281 = vpack.c.bf16 %v280, %v279
    %v282 = vld [vmem:[#allocation4] sm:$0xf]
    %v283 = vld [vmem:[#allocation4 + $0x4] sm:$0xf]
    %v284 = vld [vmem:[#allocation4 + $0x8] sm:$0xf]
    %v285 = vld [vmem:[#allocation4 + $0xc] sm:$0xf]
    %v286 = vld [vmem:[#allocation4 + $0x10] sm:$0xf]
    %v287 = vld [vmem:[#allocation4 + $0x14] sm:$0xf]
    %v288 = vld [vmem:[#allocation4 + $0x18] sm:$0xf]
    %v289 = vld [vmem:[#allocation4 + $0x1c] sm:$0xf]
    %v290 = vld [vmem:[#allocation4 + $0x20] sm:$0xf]
    %v291 = vld [vmem:[#allocation4 + $0x24] sm:$0xf]
    %v292 = vld [vmem:[#allocation4 + $0x28] sm:$0xf]
    %v293 = vld [vmem:[#allocation4 + $0x2c] sm:$0xf]
    %v294 = vld [vmem:[#allocation4 + $0x30] sm:$0xf]
    %v295 = vld [vmem:[#allocation4 + $0x34] sm:$0xf]
    %v296 = vld [vmem:[#allocation4 + $0x38] sm:$0xf]
    %v297 = vld [vmem:[#allocation4 + $0x3c] sm:$0xf]
    %v298 = vld [vmem:[%s6] sm:$0x1]
    %v300 = vperm.slane %v298, 0
    %v318 = vunpack.c.l.b16 %v282
    %v319 = vunpack.c.l.b16 %v283
    %v320 = vunpack.c.l.b16 %v284
    %v321 = vunpack.c.l.b16 %v285
    %v322 = vunpack.c.l.b16 %v286
    %v323 = vunpack.c.l.b16 %v287
    %v324 = vunpack.c.l.b16 %v288
    %v325 = vunpack.c.l.b16 %v289
    %v326 = vunpack.c.l.b16 %v290
    %v327 = vunpack.c.l.b16 %v291
    %v328 = vunpack.c.l.b16 %v292
    %v329 = vunpack.c.l.b16 %v293
    %v330 = vunpack.c.l.b16 %v294
    %v331 = vunpack.c.l.b16 %v295
    %v332 = vunpack.c.l.b16 %v296
    %v333 = vunpack.c.l.b16 %v297
    %v334 = vpack.c.b16 %v319, %v318
    %v335 = vpack.c.b16 %v321, %v320
    %v336 = vpack.c.b16 %v323, %v322
    %v337 = vpack.c.b16 %v325, %v324
    %v338 = vpack.c.b16 %v327, %v326
    %v339 = vpack.c.b16 %v329, %v328
    %v340 = vpack.c.b16 %v331, %v330
    %v341 = vpack.c.b16 %v333, %v332
    %350 = vmatpush.bf16.msra.mxu0 %v341
    %351 = vmatpush.bf16.msra.mxu0 %v340
    %352 = vmatpush.bf16.msra.mxu0 %v339
    %353 = vmatpush.bf16.msra.mxu0 %v338
    %354 = vmatpush.bf16.msra.mxu0 %v337
    %355 = vmatpush.bf16.msra.mxu0 %v336
    %356 = vmatpush.bf16.msra.mxu0 %v335
    %357 = vmatpush.bf16.msra.mxu0 %v334
    %358 = vmatmul.bf16.gmra.mxu0 %v281
    %v359 = vpop.f32.mrf.mxu0
    %v360 = vadd.f32 %v300, %v359
    %v361 = vpop.f32.mrf.mxu0
    %v362 = vadd.f32 %v300, %v361
    %363 = vdwg.mxu0
    %v364 = vld [vmem:[%s7] sm:$0x1]
    %v366 = vperm.slane %v364, 0
    %v368 = vmax.f32 %v360, %v366
    %v369 = vmax.f32 %v362, %v366
    %v370 = vld [vmem:[%s8] sm:$0x1]
    %v372 = vperm.slane %v370, 0
    %v374 = vmin.f32 %v368, %v372
    %v375 = vmin.f32 %v369, %v372
    %v376 = vpack.c.bf16 %v374, %v374
    %v377 = vpack.c.bf16 %v375, %v375
    %378 = vst [vmem:[%s9] sm:$0xf] %v376
    %379 = vst [vmem:[%s9 + $0x4] sm:$0xf] %v377
    // Predicated region
    $region46: #{ppo_actor_forward.1} parent=1 // pred_check
      _
    $region47: #{ppo_actor_forward.1} parent=1 // pred_check_branch
      %381 = sbr.rel (0) target = $region49
    $region48: #{ppo_actor_forward.1} parent=1 // pred_region
      _
    $region49: #{ppo_actor_forward.1} parent=1 // pred_fallthru
      _
    // Predicated region
    $region50: #{ppo_actor_forward.1} parent=1 // pred_check
      _
    $region51: #{ppo_actor_forward.1} parent=1 // pred_check_branch
      %383 = sbr.rel (0) target = $region53
    $region52: #{ppo_actor_forward.1} parent=1 // pred_region
      _
    $region53: #{ppo_actor_forward.1} parent=1 // pred_fallthru
      _
    %384 = vsyncpa [#allocation3], 1
    %385 = vsyncpa [#allocation5], 1

</llo_original>
